<compile_context>
chip_gen: v7x
topology: tpu7x:2x2x1
jax: 0.10.0
libtpu: 0.0.40
codegen_flags: <defaults>
</compile_context>

<pallas_src>
import functools
import math

import numpy as np
import jax
import jax.numpy as jnp
from jax.experimental import pallas as pl
from jax.experimental.pallas import tpu as pltpu

DISTILL_DIM_INFO = {
    'cifar_resnet32x4': (64, 256),
    'cifar_resnet50': (64, 64),
    'cifar_vgg13': (16, 512),
}

BN_EPS = 1e-5


# ----------------------------- Pallas kernel -------------------------------

def _fused_patch_merging_kernel(xm_ref, w_ref, shift_ref, o_ref):
    """Single fused matmul: patch-merged activations @ folded weight + BN shift.

      xm_ref    : (tm, 4C)       bf16  patch-merged activations
      w_ref     : (4C, head*N)   bf16  proj ∘ conv1x1 ∘ BN-scale fused weight
      shift_ref : (1, head*N)    f32   folded BN shift (tiled per head)
      o_ref     : (tm, head*N)   f32   head-chunked output (lane-dense, 512 wide)
    """
    z = jnp.dot(xm_ref[...], w_ref[...], preferred_element_type=jnp.float32)
    o_ref[...] = (z + shift_ref[...]).astype(o_ref.dtype)


def _pick_tile_m(m):
    """Row tile: <= 256, multiple of 16 (bf16 sublane packing); for M > 32 always
    produce >= 2 grid programs so both v7x TensorCores get work and the
    double-buffer DMA/compute pipeline overlaps on v5e/v6e."""
    if m <= 32:
        return m
    for t in (256, 128, 64, 32, 16):
        if m % t == 0 and m // t >= 2:
            return t
    return m


def fused_patch_merging_matmul(xm, w_fused, shift, *, out_dtype=jnp.float32):
    """xm: (M, 4C) bf16 -> (M, head*out_dim) in one pallas_call."""
    M, c4 = xm.shape
    nout = w_fused.shape[1]
    assert w_fused.shape[0] == c4
    assert shift.shape == (1, nout)
    tm = _pick_tile_m(M)
    assert M % tm == 0 and tm % 16 == 0, (M, tm)        # bf16 sublane packing
    grid = (M // tm,)
    return pl.pallas_call(
        _fused_patch_merging_kernel,
        out_shape=jax.ShapeDtypeStruct((M, nout), out_dtype),
        grid=grid,
        in_specs=[
            pl.BlockSpec((tm, c4), lambda i: (i, 0)),
            pl.BlockSpec((c4, nout), lambda i: (0, 0)),
            pl.BlockSpec((1, nout), lambda i: (0, 0)),
        ],
        out_specs=pl.BlockSpec((tm, nout), lambda i: (i, 0)),
        compiler_params=pltpu.CompilerParams(
            dimension_semantics=("parallel",)),
    )(xm, w_fused, shift)


# ----------------------------- params & folding ----------------------------

def init_params(key, dim, out_dim, head):
    """PyTorch-layout parameters (Linear/Conv2d weight = (out, in))."""
    k = jax.random.split(key, 7)
    c4 = dim * 4
    return {
        'proj_w': jax.random.normal(k[0], (head * c4, c4), jnp.float32) * 0.02,
        'conv_w': jax.random.normal(k[1], (out_dim, c4), jnp.float32) * 0.02,
        'conv_b': jax.random.normal(k[2], (out_dim,), jnp.float32) * 0.01,
        'bn_gamma': 1.0 + 0.1 * jax.random.normal(k[3], (out_dim,), jnp.float32),
        'bn_beta': 0.1 * jax.random.normal(k[4], (out_dim,), jnp.float32),
        'bn_mean': 0.1 * jax.random.normal(k[5], (out_dim,), jnp.float32),
        'bn_var': 0.5 + jax.random.uniform(k[6], (out_dim,), jnp.float32),
    }


def prepare_inference_params(params, head, eps=BN_EPS):
    """One-time host-side prep: fold proj ∘ conv1x1 ∘ eval-mode BN into a single
    bf16 weight (folded in f32 first) plus one f32 shift row."""
    scale = params['bn_gamma'] / jnp.sqrt(params['bn_var'] + eps)              # (N,)
    shift = params['bn_beta'] + (params['conv_b'] - params['bn_mean']) * scale  # (N,)
    conv_wf = params['conv_w'].T * scale[None, :]                              # (4C, N)  f32
    proj_wT = params['proj_w'].T                                               # (4C, head*4C) f32
    c4 = proj_wT.shape[0]
    n = conv_wf.shape[1]
    # W_fused[:, h*N:(h+1)*N] = proj_wT[:, h*4C:(h+1)*4C] @ conv_wf   (folded in f32)
    w_fused = jnp.einsum('ahk,kn->ahn',
                         proj_wT.reshape(c4, head, c4), conv_wf).reshape(c4, head * n)
    shift_t = jnp.tile(shift, head).reshape(1, head * n)                       # (1, head*N)
    return {
        'w_fused': w_fused.astype(jnp.bfloat16),                               # (4C, head*N)
        'shift': shift_t.astype(jnp.float32),                                  # (1, head*N)
    }


# ----------------------------- module wrapper ------------------------------

def patch_merge(x, H, W):
    """(B, H*W, C) -> (B*(H/2)*(W/2), 4C) with PyTorch [x0,x1,x2,x3] channel order."""
    B, L, C = x.shape
    xv = x.reshape(B, H // 2, 2, W // 2, 2, C)          # (b, i, hp, j, wp, c)
    # concat order [x0,x1,x2,x3] = (hp,wp) in (0,0),(1,0),(0,1),(1,1) -> k = hp + 2*wp,
    # i.e. (wp, hp) major-to-minor before C.  One XLA transpose over ~32 KiB.
    xm = xv.transpose(0, 1, 3, 4, 2, 5)                 # (b, i, j, wp, hp, c)
    return xm.reshape(B * (H // 2) * (W // 2), 4 * C)


def patch_merging_forward(x, folded, input_resolution, out_dim, head=4):
    """x: (B, L, C) with L == H*W.  Returns NCHW (B, out_dim, H, W)."""
    H, W = input_resolution
    B, L, C = x.shape
    assert L == H * W, 'input feature has wrong size'
    assert H % 2 == 0 and W % 2 == 0, f'x size ({H}*{W}) are not even.'
    Hh, Wh = H // 2, W // 2
    half = int(head ** 0.5)
    assert half * half == head and Hh == Wh, 'square grid / perfect-square head assumed'

    # glue: 2x2 strided patch merge (single XLA transpose) + bf16 cast for the MXU
    xm = patch_merge(x, H, W).astype(jnp.bfloat16)                        # (B*L2, 4C)

    # fused Pallas kernel: (proj ∘ conv1x1 ∘ BN) as a single matmul + shift
    z = fused_patch_merging_matmul(xm, folded['w_fused'], folded['shift'])  # (B*L2, head*N)

    # glue: the PyTorch double-view is exactly this raster re-flattening
    z = z.reshape(B, Hh, Wh, head, out_dim).reshape(B, Hh * half, Wh * half, out_dim)
    # NCHW once, at the module boundary (matches Conv2d/BatchNorm2d output layout)
    return z.transpose(0, 3, 1, 2)                       # act = Identity


# ----------------------------- references ----------------------------------

def mirror_reference(x, folded, input_resolution, out_dim, head=4):
    """Plain-JAX mirror of the exact fused bf16 dataflow (tight check of the kernel)."""
    H, W = input_resolution
    B, L, C = x.shape
    Hh, Wh = H // 2, W // 2
    half = int(head ** 0.5)
    xm = patch_merge(x, H, W).astype(jnp.bfloat16)
    z = jnp.dot(xm, folded['w_fused'], preferred_element_type=jnp.float32) + folded['shift']
    z = z.reshape(B, Hh, Wh, head, out_dim).reshape(B, Hh * half, Wh * half, out_dim)
    return z.transpose(0, 3, 1, 2)


def reference_forward(x, params, input_resolution, out_dim, head=4):
    """Faithful f32 reference mirroring the PyTorch forward (eval-mode BN)."""
    H, W = input_resolution
    B, L, C = x.shape
    xv = x.reshape(B, H, W, C)
    x0 = xv[:, 0::2, 0::2, :]
    x1 = xv[:, 1::2, 0::2, :]
    x2 = xv[:, 0::2, 1::2, :]
    x3 = xv[:, 1::2, 1::2, :]
    xm = jnp.concatenate([x0, x1, x2, x3], -1)
    c4 = 4 * C
    xm = xm.reshape(B, -1, c4)
    y = xm @ params['proj_w'].T
    L2 = y.shape[1]
    Hh = Wh = int(math.sqrt(L2))
    half = int(head ** 0.5)
    y = y.reshape(B, Hh, Wh, c4 * head).reshape(B, Hh * half, Wh * half, c4)
    y = jnp.transpose(y, (0, 3, 1, 2))                   # NCHW
    z = jnp.einsum('bchw,oc->bohw', y, params['conv_w'])
    z = z + params['conv_b'][None, :, None, None]
    inv = 1.0 / jnp.sqrt(params['bn_var'] + BN_EPS)
    z = (z - params['bn_mean'][None, :, None, None]) * inv[None, :, None, None]
    z = z * params['bn_gamma'][None, :, None, None] + params['bn_beta'][None, :, None, None]
    return z


# ----------------------------------- main -----------------------------------

if __name__ == "__main__":
    model_name = 'cifar_resnet50'
    model_t = 'cifar_resnet32x4'
    L, C = DISTILL_DIM_INFO[model_name]                  # (64, 64)
    input_resolution = (8, 8)                            # H*W == L -> no `trans` branch
    dim, out_dim, head, B = C, 128, 4, 2

    key = jax.random.PRNGKey(0)
    kx, kp = jax.random.split(key)
    x = jax.random.normal(kx, (B, L, C), jnp.float32)
    params = init_params(kp, dim, out_dim, head)
    folded = prepare_inference_params(params, head)      # one-time weight fusion/folding

    fwd = jax.jit(functools.partial(
        patch_merging_forward, input_resolution=input_resolution,
        out_dim=out_dim, head=head))
    out = jax.block_until_ready(fwd(x, folded))

    H, W = input_resolution
    assert out.shape == (B, out_dim, H, W), out.shape

    # Tight check vs a plain-JAX mirror of the exact fused/bf16 dataflow.
    mir = mirror_reference(x, folded, input_resolution, out_dim, head)
    np.testing.assert_allclose(np.asarray(out), np.asarray(mir), rtol=1e-3, atol=1e-3)

    # Loose check vs the faithful f32 PyTorch-semantics reference
    # (slack only for the single bf16-rounded fused weight / matmul operands).
    ref = reference_forward(x, params, input_resolution, out_dim, head)
    np.testing.assert_allclose(np.asarray(out), np.asarray(ref), rtol=2e-2, atol=2e-2)

    print("KERNEL_OK")
</pallas_src>

<mosaic_0001>
module attributes {stable_mosaic.version = 11 : i64} {
  func.func @_fused_patch_merging_kernel(%arg0: i32, %arg1: memref<32x256xbf16, #tpu.memory_space<vmem>>, %arg2: memref<256x512xbf16, #tpu.memory_space<vmem>>, %arg3: memref<1x512xf32, #tpu.memory_space<vmem>>, %arg4: memref<32x512xf32, #tpu.memory_space<vmem>>) attributes {dimension_semantics = [#tpu.dimension_semantics<parallel>], iteration_bounds = array<i64: 1>, scalar_prefetch = 0 : i64, scratch_operands = 0 : i64, tpu.core_type = #tpu.core_type<tc>, window_params = [{transform_indices = @transform_0, window_bounds = array<i64: 32, 256>}, {pipeline_mode = #tpu.pipeline_mode<synchronous>, transform_indices = @transform_1, window_bounds = array<i64: 256, 512>}, {pipeline_mode = #tpu.pipeline_mode<synchronous>, transform_indices = @transform_2, window_bounds = array<i64: 1, 512>}, {transform_indices = @transform_3, window_bounds = array<i64: 32, 512>}]} {
    %c0 = arith.constant 0 : index
    %c0_0 = arith.constant 0 : index
    %0 = vector.load %arg1[%c0, %c0_0] : memref<32x256xbf16, #tpu.memory_space<vmem>>, vector<32x256xbf16>
    %c0_1 = arith.constant 0 : index
    %c0_2 = arith.constant 0 : index
    %1 = vector.load %arg2[%c0_1, %c0_2] : memref<256x512xbf16, #tpu.memory_space<vmem>>, vector<256x512xbf16>
    %cst = arith.constant dense<0.000000e+00> : vector<32x512xf32>
    %2 = tpu.matmul %0, %1, %cst {dimension_numbers = #tpu.dot_dimension_numbers<[1], [0], [0], [1], [0, 0, 1, 1], [], []>} : vector<32x256xbf16>, vector<256x512xbf16>, vector<32x512xf32> -> vector<32x512xf32>
    %c0_3 = arith.constant 0 : index
    %c0_4 = arith.constant 0 : index
    %3 = vector.load %arg3[%c0_3, %c0_4] : memref<1x512xf32, #tpu.memory_space<vmem>>, vector<1x512xf32>
    %4 = vector.broadcast %3 : vector<1x512xf32> to vector<32x512xf32>
    %5 = arith.addf %2, %4 : vector<32x512xf32>
    %c0_5 = arith.constant 0 : index
    %c0_6 = arith.constant 0 : index
    %6 = vector.load %arg4[%c0_5, %c0_6] : memref<32x512xf32, #tpu.memory_space<vmem>>, vector<32x512xf32>
    tpu.vector_store %arg4[%c0_5, %c0_6], %5 {strides = array<i32>} : memref<32x512xf32, #tpu.memory_space<vmem>>, vector<32x512xf32>,
    return
  }
  func.func @transform_0(%arg0: i32) -> (i32, i32) {
    %c0_i32 = arith.constant 0 : i32
    %c0_i32_0 = arith.constant 0 : i32
    return %arg0, %c0_i32 : i32, i32
  }
  func.func @transform_1(%arg0: i32) -> (i32, i32) {
    %c0_i32 = arith.constant 0 : i32
    %c0_i32_0 = arith.constant 0 : i32
    %c0_i32_1 = arith.constant 0 : i32
    return %c0_i32, %c0_i32_0 : i32, i32
  }
  func.func @transform_2(%arg0: i32) -> (i32, i32) {
    %c0_i32 = arith.constant 0 : i32
    %c0_i32_0 = arith.constant 0 : i32
    %c0_i32_1 = arith.constant 0 : i32
    return %c0_i32, %c0_i32_0 : i32, i32
  }
  func.func @transform_3(%arg0: i32) -> (i32, i32) {
    %c0_i32 = arith.constant 0 : i32
    %c0_i32_0 = arith.constant 0 : i32
    return %arg0, %c0_i32 : i32, i32
  }
}

</mosaic_0001>

<llo_original>
// kernel: patch_merging_forward.1
$region0: #{patch_merging_forward.1}
  #allocation0 [shape = 'u32[]', space=smem, size = 0x4, offset = 0x4, fixed_abs, tag = 'smem constant byte address 0x4 - core index']
  #allocation1 [shape = 'u32[144,128]{1,0:T(1,128)}', space=vmem, size = 0x12000, scoped, tag = 'internal scratch']
  %s0 = inlined_call_operand.vmem [shape: bf16[32,256], index: 0, kind: input, shape index: {}]
  %s1 = inlined_call_operand.hbm [shape: bf16[256,512], index: 1, kind: input, shape index: {}]
  %s2 = inlined_call_operand.vmem [shape: f32[1,512], index: 2, kind: input, shape index: {}]
  %s3 = inlined_call_operand.vmem [shape: f32[32,512], index: 3, kind: output, shape index: {}]
  %s4 = sld [smem:[#allocation0]]
  $region26: #{patch_merging_forward.1} parent=0
    _
  %s6 = ssub.s32 1, %s4
  %s7 = scalar_select 0, %s6, %s4
  $region1: #{patch_merging_forward.1} parent=0
    #allocation2 [shape = 'u8[262144]{0}', space=vmem, size = 0x40000, scoped, tag = 'input window, operand 1, single buffered']
    #allocation3 [shape = 's32[1]{0}', space=sflag, size = 0x4, scoped, tag = 'scoped memory for patch_merging_forward.1']
    %8 = vsyncpa [#allocation3], 0
    // Predicated region
    $region2: #{patch_merging_forward.1} parent=1 // pred_check
      _
    $region3: #{patch_merging_forward.1} parent=1 // pred_check_branch
      %10 = sbr.rel (0) target = $region5
    $region4: #{patch_merging_forward.1} parent=1 // pred_region
      _
    $region5: #{patch_merging_forward.1} parent=1 // pred_fallthru
      _
    // Predicated region
    $region6: #{patch_merging_forward.1} parent=1 // pred_check
      _
    $region7: #{patch_merging_forward.1} parent=1 // pred_check_branch
      %12 = sbr.rel (0) target = $region9
    $region8: #{patch_merging_forward.1} parent=1 // pred_region
      %s14 = ssub.s32 8192, 8192
      %15 = vsyncadd [#allocation3], %s14
      %s16 = sshll.u32 [#allocation2], 4
      %s17 = int_to_ptr.vmem [resolvable:$true] %s16
      %22 = dma.hbm_to_vmem [thread:$0]  %s1, 8192, %s17, [#allocation3], 256, 256, 16
    $region9: #{patch_merging_forward.1} parent=1 // pred_fallthru
      _
    // Predicated region
    $region10: #{patch_merging_forward.1} parent=1 // pred_check
      _
    $region11: #{patch_merging_forward.1} parent=1 // pred_check_branch
      %24 = sbr.rel (0) target = $region13
    $region12: #{patch_merging_forward.1} parent=1 // pred_region
      _
    $region13: #{patch_merging_forward.1} parent=1 // pred_fallthru
      _
    // Predicated region
    $region14: #{patch_merging_forward.1} parent=1 // pred_check
      _
    $region15: #{patch_merging_forward.1} parent=1 // pred_check_branch
      %26 = sbr.rel (0) target = $region17
    $region16: #{patch_merging_forward.1} parent=1 // pred_region
      %27 = dma.done [#allocation3], 8192
    $region17: #{patch_merging_forward.1} parent=1 // pred_fallthru
      _
    %v28 = vld [vmem:[%s0] sm:$0xff]
    %v29 = vld [vmem:[%s0 + $0x8] sm:$0xff]
    %v30 = vld [vmem:[%s0 + $0x10] sm:$0xff]
    %v31 = vld [vmem:[%s0 + $0x18] sm:$0xff]
    %v32 = vld [vmem:[#allocation2] sm:$0xff]
    %v33 = vld [vmem:[#allocation2 + $0x8] sm:$0xff]
    %v34 = vld [vmem:[#allocation2 + $0x10] sm:$0xff]
    %v35 = vld [vmem:[#allocation2 + $0x18] sm:$0xff]
    %v36 = vld [vmem:[#allocation2 + $0x20] sm:$0xff]
    %v37 = vld [vmem:[#allocation2 + $0x28] sm:$0xff]
    %v38 = vld [vmem:[#allocation2 + $0x30] sm:$0xff]
    %v39 = vld [vmem:[#allocation2 + $0x38] sm:$0xff]
    %v40 = vld [vmem:[#allocation2 + $0x40] sm:$0xff]
    %v41 = vld [vmem:[#allocation2 + $0x48] sm:$0xff]
    %v42 = vld [vmem:[#allocation2 + $0x50] sm:$0xff]
    %v43 = vld [vmem:[#allocation2 + $0x58] sm:$0xff]
    %v44 = vld [vmem:[#allocation2 + $0x60] sm:$0xff]
    %v45 = vld [vmem:[#allocation2 + $0x68] sm:$0xff]
    %v46 = vld [vmem:[#allocation2 + $0x70] sm:$0xff]
    %v47 = vld [vmem:[#allocation2 + $0x78] sm:$0xff]
    %v48 = vld [vmem:[#allocation2 + $0x80] sm:$0xff]
    %v49 = vld [vmem:[#allocation2 + $0x88] sm:$0xff]
    %v50 = vld [vmem:[#allocation2 + $0x90] sm:$0xff]
    %v51 = vld [vmem:[#allocation2 + $0x98] sm:$0xff]
    %v52 = vld [vmem:[#allocation2 + $0xa0] sm:$0xff]
    %v53 = vld [vmem:[#allocation2 + $0xa8] sm:$0xff]
    %v54 = vld [vmem:[#allocation2 + $0xb0] sm:$0xff]
    %v55 = vld [vmem:[#allocation2 + $0xb8] sm:$0xff]
    %v56 = vld [vmem:[#allocation2 + $0xc0] sm:$0xff]
    %v57 = vld [vmem:[#allocation2 + $0xc8] sm:$0xff]
    %v58 = vld [vmem:[#allocation2 + $0xd0] sm:$0xff]
    %v59 = vld [vmem:[#allocation2 + $0xd8] sm:$0xff]
    %v60 = vld [vmem:[#allocation2 + $0xe0] sm:$0xff]
    %v61 = vld [vmem:[#allocation2 + $0xe8] sm:$0xff]
    %v62 = vld [vmem:[#allocation2 + $0xf0] sm:$0xff]
    %v63 = vld [vmem:[#allocation2 + $0xf8] sm:$0xff]
    %v64 = vld [vmem:[#allocation2 + $0x100] sm:$0xff]
    %v65 = vld [vmem:[#allocation2 + $0x108] sm:$0xff]
    %v66 = vld [vmem:[#allocation2 + $0x110] sm:$0xff]
    %v67 = vld [vmem:[#allocation2 + $0x118] sm:$0xff]
    %v68 = vld [vmem:[#allocation2 + $0x120] sm:$0xff]
    %v69 = vld [vmem:[#allocation2 + $0x128] sm:$0xff]
    %v70 = vld [vmem:[#allocation2 + $0x130] sm:$0xff]
    %v71 = vld [vmem:[#allocation2 + $0x138] sm:$0xff]
    %v72 = vld [vmem:[#allocation2 + $0x140] sm:$0xff]
    %v73 = vld [vmem:[#allocation2 + $0x148] sm:$0xff]
    %v74 = vld [vmem:[#allocation2 + $0x150] sm:$0xff]
    %v75 = vld [vmem:[#allocation2 + $0x158] sm:$0xff]
    %v76 = vld [vmem:[#allocation2 + $0x160] sm:$0xff]
    %v77 = vld [vmem:[#allocation2 + $0x168] sm:$0xff]
    %v78 = vld [vmem:[#allocation2 + $0x170] sm:$0xff]
    %v79 = vld [vmem:[#allocation2 + $0x178] sm:$0xff]
    %v80 = vld [vmem:[#allocation2 + $0x180] sm:$0xff]
    %v81 = vld [vmem:[#allocation2 + $0x188] sm:$0xff]
    %v82 = vld [vmem:[#allocation2 + $0x190] sm:$0xff]
    %v83 = vld [vmem:[#allocation2 + $0x198] sm:$0xff]
    %v84 = vld [vmem:[#allocation2 + $0x1a0] sm:$0xff]
    %v85 = vld [vmem:[#allocation2 + $0x1a8] sm:$0xff]
    %v86 = vld [vmem:[#allocation2 + $0x1b0] sm:$0xff]
    %v87 = vld [vmem:[#allocation2 + $0x1b8] sm:$0xff]
    %v88 = vld [vmem:[#allocation2 + $0x1c0] sm:$0xff]
    %v89 = vld [vmem:[#allocation2 + $0x1c8] sm:$0xff]
    %v90 = vld [vmem:[#allocation2 + $0x1d0] sm:$0xff]
    %v91 = vld [vmem:[#allocation2 + $0x1d8] sm:$0xff]
    %v92 = vld [vmem:[#allocation2 + $0x1e0] sm:$0xff]
    %v93 = vld [vmem:[#allocation2 + $0x1e8] sm:$0xff]
    %v94 = vld [vmem:[#allocation2 + $0x1f0] sm:$0xff]
    %v95 = vld [vmem:[#allocation2 + $0x1f8] sm:$0xff]
    %v96 = vld [vmem:[%s2] sm:$0xf]
    %v98 = vlaneseq
    %v99 = vshrl.u32 %v98, 7
    %v100 = vsub.s32 0, %v99
    %v101 = vrot.slane %v96, %v100
    %v102 = vlaneseq
    %v103 = vshrl.u32 %v102, 7
    %v104 = vsub.s32 1, %v103
    %v105 = vrot.slane %v96, %v104
    %v106 = vlaneseq
    %v107 = vshrl.u32 %v106, 7
    %v108 = vsub.s32 2, %v107
    %v109 = vrot.slane %v96, %v108
    %v110 = vlaneseq
    %v111 = vshrl.u32 %v110, 7
    %v112 = vsub.s32 3, %v111
    %v113 = vrot.slane %v96, %v112
    %v122 = vunpack.c.l.b16 %v28
    %v123 = vunpack.c.h.b16 %v28
    %v124 = vunpack.c.l.b16 %v29
    %v125 = vunpack.c.h.b16 %v29
    %v126 = vunpack.c.l.b16 %v30
    %v127 = vunpack.c.h.b16 %v30
    %v128 = vunpack.c.l.b16 %v31
    %v129 = vunpack.c.h.b16 %v31
    %v130 = vpack.c.b16 %v124, %v122
    %v131 = vpack.c.b16 %v125, %v123
    %v132 = vpack.c.b16 %v128, %v126
    %v133 = vpack.c.b16 %v129, %v127
    %v202 = vunpack.c.l.b16 %v32
    %v203 = vunpack.c.h.b16 %v32
    %v204 = vunpack.c.l.b16 %v33
    %v205 = vunpack.c.h.b16 %v33
    %v206 = vunpack.c.l.b16 %v34
    %v207 = vunpack.c.h.b16 %v34
    %v208 = vunpack.c.l.b16 %v35
    %v209 = vunpack.c.h.b16 %v35
    %v210 = vunpack.c.l.b16 %v36
    %v211 = vunpack.c.h.b16 %v36
    %v212 = vunpack.c.l.b16 %v37
    %v213 = vunpack.c.h.b16 %v37
    %v214 = vunpack.c.l.b16 %v38
    %v215 = vunpack.c.h.b16 %v38
    %v216 = vunpack.c.l.b16 %v39
    %v217 = vunpack.c.h.b16 %v39
    %v218 = vunpack.c.l.b16 %v40
    %v219 = vunpack.c.h.b16 %v40
    %v220 = vunpack.c.l.b16 %v41
    %v221 = vunpack.c.h.b16 %v41
    %v222 = vunpack.c.l.b16 %v42
    %v223 = vunpack.c.h.b16 %v42
    %v224 = vunpack.c.l.b16 %v43
    %v225 = vunpack.c.h.b16 %v43
    %v226 = vunpack.c.l.b16 %v44
    %v227 = vunpack.c.h.b16 %v44
    %v228 = vunpack.c.l.b16 %v45
    %v229 = vunpack.c.h.b16 %v45
    %v230 = vunpack.c.l.b16 %v46
    %v231 = vunpack.c.h.b16 %v46
    %v232 = vunpack.c.l.b16 %v47
    %v233 = vunpack.c.h.b16 %v47
    %v234 = vunpack.c.l.b16 %v48
    %v235 = vunpack.c.h.b16 %v48
    %v236 = vunpack.c.l.b16 %v49
    %v237 = vunpack.c.h.b16 %v49
    %v238 = vunpack.c.l.b16 %v50
    %v239 = vunpack.c.h.b16 %v50
    %v240 = vunpack.c.l.b16 %v51
    %v241 = vunpack.c.h.b16 %v51
    %v242 = vunpack.c.l.b16 %v52
    %v243 = vunpack.c.h.b16 %v52
    %v244 = vunpack.c.l.b16 %v53
    %v245 = vunpack.c.h.b16 %v53
    %v246 = vunpack.c.l.b16 %v54
    %v247 = vunpack.c.h.b16 %v54
    %v248 = vunpack.c.l.b16 %v55
    %v249 = vunpack.c.h.b16 %v55
    %v250 = vunpack.c.l.b16 %v56
    %v251 = vunpack.c.h.b16 %v56
    %v252 = vunpack.c.l.b16 %v57
    %v253 = vunpack.c.h.b16 %v57
    %v254 = vunpack.c.l.b16 %v58
    %v255 = vunpack.c.h.b16 %v58
    %v256 = vunpack.c.l.b16 %v59
    %v257 = vunpack.c.h.b16 %v59
    %v258 = vunpack.c.l.b16 %v60
    %v259 = vunpack.c.h.b16 %v60
    %v260 = vunpack.c.l.b16 %v61
    %v261 = vunpack.c.h.b16 %v61
    %v262 = vunpack.c.l.b16 %v62
    %v263 = vunpack.c.h.b16 %v62
    %v264 = vunpack.c.l.b16 %v63
    %v265 = vunpack.c.h.b16 %v63
    %v266 = vunpack.c.l.b16 %v64
    %v267 = vunpack.c.h.b16 %v64
    %v268 = vunpack.c.l.b16 %v65
    %v269 = vunpack.c.h.b16 %v65
    %v270 = vunpack.c.l.b16 %v66
    %v271 = vunpack.c.h.b16 %v66
    %v272 = vunpack.c.l.b16 %v67
    %v273 = vunpack.c.h.b16 %v67
    %v274 = vunpack.c.l.b16 %v68
    %v275 = vunpack.c.h.b16 %v68
    %v276 = vunpack.c.l.b16 %v69
    %v277 = vunpack.c.h.b16 %v69
    %v278 = vunpack.c.l.b16 %v70
    %v279 = vunpack.c.h.b16 %v70
    %v280 = vunpack.c.l.b16 %v71
    %v281 = vunpack.c.h.b16 %v71
    %v282 = vunpack.c.l.b16 %v72
    %v283 = vunpack.c.h.b16 %v72
    %v284 = vunpack.c.l.b16 %v73
    %v285 = vunpack.c.h.b16 %v73
    %v286 = vunpack.c.l.b16 %v74
    %v287 = vunpack.c.h.b16 %v74
    %v288 = vunpack.c.l.b16 %v75
    %v289 = vunpack.c.h.b16 %v75
    %v290 = vunpack.c.l.b16 %v76
    %v291 = vunpack.c.h.b16 %v76
    %v292 = vunpack.c.l.b16 %v77
    %v293 = vunpack.c.h.b16 %v77
    %v294 = vunpack.c.l.b16 %v78
    %v295 = vunpack.c.h.b16 %v78
    %v296 = vunpack.c.l.b16 %v79
    %v297 = vunpack.c.h.b16 %v79
    %v298 = vunpack.c.l.b16 %v80
    %v299 = vunpack.c.h.b16 %v80
    %v300 = vunpack.c.l.b16 %v81
    %v301 = vunpack.c.h.b16 %v81
    %v302 = vunpack.c.l.b16 %v82
    %v303 = vunpack.c.h.b16 %v82
    %v304 = vunpack.c.l.b16 %v83
    %v305 = vunpack.c.h.b16 %v83
    %v306 = vunpack.c.l.b16 %v84
    %v307 = vunpack.c.h.b16 %v84
    %v308 = vunpack.c.l.b16 %v85
    %v309 = vunpack.c.h.b16 %v85
    %v310 = vunpack.c.l.b16 %v86
    %v311 = vunpack.c.h.b16 %v86
    %v312 = vunpack.c.l.b16 %v87
    %v313 = vunpack.c.h.b16 %v87
    %v314 = vunpack.c.l.b16 %v88
    %v315 = vunpack.c.h.b16 %v88
    %v316 = vunpack.c.l.b16 %v89
    %v317 = vunpack.c.h.b16 %v89
    %v318 = vunpack.c.l.b16 %v90
    %v319 = vunpack.c.h.b16 %v90
    %v320 = vunpack.c.l.b16 %v91
    %v321 = vunpack.c.h.b16 %v91
    %v322 = vunpack.c.l.b16 %v92
    %v323 = vunpack.c.h.b16 %v92
    %v324 = vunpack.c.l.b16 %v93
    %v325 = vunpack.c.h.b16 %v93
    %v326 = vunpack.c.l.b16 %v94
    %v327 = vunpack.c.h.b16 %v94
    %v328 = vunpack.c.l.b16 %v95
    %v329 = vunpack.c.h.b16 %v95
    %v330 = vpack.c.b16 %v206, %v202
    %v331 = vpack.c.b16 %v207, %v203
    %v332 = vpack.c.b16 %v208, %v204
    %v333 = vpack.c.b16 %v209, %v205
    %v334 = vpack.c.b16 %v214, %v210
    %v335 = vpack.c.b16 %v215, %v211
    %v336 = vpack.c.b16 %v216, %v212
    %v337 = vpack.c.b16 %v217, %v213
    %v338 = vpack.c.b16 %v222, %v218
    %v339 = vpack.c.b16 %v223, %v219
    %v340 = vpack.c.b16 %v224, %v220
    %v341 = vpack.c.b16 %v225, %v221
    %v342 = vpack.c.b16 %v230, %v226
    %v343 = vpack.c.b16 %v231, %v227
    %v344 = vpack.c.b16 %v232, %v228
    %v345 = vpack.c.b16 %v233, %v229
    %v346 = vpack.c.b16 %v238, %v234
    %v347 = vpack.c.b16 %v239, %v235
    %v348 = vpack.c.b16 %v240, %v236
    %v349 = vpack.c.b16 %v241, %v237
    %v350 = vpack.c.b16 %v246, %v242
    %v351 = vpack.c.b16 %v247, %v243
    %v352 = vpack.c.b16 %v248, %v244
    %v353 = vpack.c.b16 %v249, %v245
    %v354 = vpack.c.b16 %v254, %v250
    %v355 = vpack.c.b16 %v255, %v251
    %v356 = vpack.c.b16 %v256, %v252
    %v357 = vpack.c.b16 %v257, %v253
    %v358 = vpack.c.b16 %v262, %v258
    %v359 = vpack.c.b16 %v263, %v259
    %v360 = vpack.c.b16 %v264, %v260
    %v361 = vpack.c.b16 %v265, %v261
    %v362 = vpack.c.b16 %v270, %v266
    %v363 = vpack.c.b16 %v271, %v267
    %v364 = vpack.c.b16 %v272, %v268
    %v365 = vpack.c.b16 %v273, %v269
    %v366 = vpack.c.b16 %v278, %v274
    %v367 = vpack.c.b16 %v279, %v275
    %v368 = vpack.c.b16 %v280, %v276
    %v369 = vpack.c.b16 %v281, %v277
    %v370 = vpack.c.b16 %v286, %v282
    %v371 = vpack.c.b16 %v287, %v283
    %v372 = vpack.c.b16 %v288, %v284
    %v373 = vpack.c.b16 %v289, %v285
    %v374 = vpack.c.b16 %v294, %v290
    %v375 = vpack.c.b16 %v295, %v291
    %v376 = vpack.c.b16 %v296, %v292
    %v377 = vpack.c.b16 %v297, %v293
    %v378 = vpack.c.b16 %v302, %v298
    %v379 = vpack.c.b16 %v303, %v299
    %v380 = vpack.c.b16 %v304, %v300
    %v381 = vpack.c.b16 %v305, %v301
    %v382 = vpack.c.b16 %v310, %v306
    %v383 = vpack.c.b16 %v311, %v307
    %v384 = vpack.c.b16 %v312, %v308
    %v385 = vpack.c.b16 %v313, %v309
    %v386 = vpack.c.b16 %v318, %v314
    %v387 = vpack.c.b16 %v319, %v315
    %v388 = vpack.c.b16 %v320, %v316
    %v389 = vpack.c.b16 %v321, %v317
    %v390 = vpack.c.b16 %v326, %v322
    %v391 = vpack.c.b16 %v327, %v323
    %v392 = vpack.c.b16 %v328, %v324
    %v393 = vpack.c.b16 %v329, %v325
    %458 = vmatprep.subr.bf16.mxu0 %v331
    %459 = vmatpush1.bf16.msra.mxu0 %v330
    %460 = vmatprep.subr.bf16.mxu0 %v335
    %461 = vmatpush1.bf16.msra.mxu0 %v334
    %462 = vmatprep.subr.bf16.mxu0 %v339
    %463 = vmatpush1.bf16.msra.mxu0 %v338
    %464 = vmatprep.subr.bf16.mxu0 %v343
    %465 = vmatpush1.bf16.msra.mxu0 %v342
    %466 = vmatprep.subr.bf16.mxu0 %v347
    %467 = vmatpush1.bf16.msra.mxu0 %v346
    %468 = vmatprep.subr.bf16.mxu0 %v351
    %469 = vmatpush1.bf16.msra.mxu0 %v350
    %470 = vmatprep.subr.bf16.mxu0 %v355
    %471 = vmatpush1.bf16.msra.mxu0 %v354
    %472 = vmatprep.subr.bf16.mxu0 %v359
    %473 = vmatpush1.bf16.msra.mxu0 %v358
    %474 = vmatprep.subr.bf16.mxu0 %v363
    %475 = vmatpush1.bf16.msra.mxu0 %v362
    %476 = vmatprep.subr.bf16.mxu0 %v367
    %477 = vmatpush1.bf16.msra.mxu0 %v366
    %478 = vmatprep.subr.bf16.mxu0 %v371
    %479 = vmatpush1.bf16.msra.mxu0 %v370
    %480 = vmatprep.subr.bf16.mxu0 %v375
    %481 = vmatpush1.bf16.msra.mxu0 %v374
    %482 = vmatprep.subr.bf16.mxu0 %v379
    %483 = vmatpush1.bf16.msra.mxu0 %v378
    %484 = vmatprep.subr.bf16.mxu0 %v383
    %485 = vmatpush1.bf16.msra.mxu0 %v382
    %486 = vmatprep.subr.bf16.mxu0 %v387
    %487 = vmatpush1.bf16.msra.mxu0 %v386
    %488 = vmatprep.subr.bf16.mxu0 %v391
    %489 = vmatpush1.bf16.msra.mxu0 %v390
    %490 = vmatprep.mubr.bf16.mxu0 %v131
    %491 = vmatmul.mubr.bf16.gmra.mrb[0].mxu0 %v130
    %v492 = vpop.f32.mrb[0].mxu0
    %v493 = vadd.f32 %v101, %v492
    %v494 = vpop.f32.mrb[0].mxu0
    %v495 = vadd.f32 %v105, %v494
    %v496 = vpop.f32.mrb[0].mxu0
    %v497 = vadd.f32 %v101, %v496
    %v498 = vpop.f32.mrb[0].mxu0
    %v499 = vadd.f32 %v105, %v498
    %500 = vmatprep.mubr.bf16.mxu0 %v133
    %501 = vmatmul.mubr.bf16.gmra.mrb[0].mxu0 %v132
    %v502 = vpop.f32.mrb[0].mxu0
    %v503 = vadd.f32 %v101, %v502
    %v504 = vpop.f32.mrb[0].mxu0
    %v505 = vadd.f32 %v105, %v504
    %v506 = vpop.f32.mrb[0].mxu0
    %v507 = vadd.f32 %v101, %v506
    %v508 = vpop.f32.mrb[0].mxu0
    %v509 = vadd.f32 %v105, %v508
    %510 = vdwg.mxu0
    %511 = vmatprep.subr.bf16.mxu0 %v333
    %512 = vmatpush1.bf16.msra.mxu0 %v332
    %513 = vmatprep.subr.bf16.mxu0 %v337
    %514 = vmatpush1.bf16.msra.mxu0 %v336
    %515 = vmatprep.subr.bf16.mxu0 %v341
    %516 = vmatpush1.bf16.msra.mxu0 %v340
    %517 = vmatprep.subr.bf16.mxu0 %v345
    %518 = vmatpush1.bf16.msra.mxu0 %v344
    %519 = vmatprep.subr.bf16.mxu0 %v349
    %520 = vmatpush1.bf16.msra.mxu0 %v348
    %521 = vmatprep.subr.bf16.mxu0 %v353
    %522 = vmatpush1.bf16.msra.mxu0 %v352
    %523 = vmatprep.subr.bf16.mxu0 %v357
    %524 = vmatpush1.bf16.msra.mxu0 %v356
    %525 = vmatprep.subr.bf16.mxu0 %v361
    %526 = vmatpush1.bf16.msra.mxu0 %v360
    %527 = vmatprep.subr.bf16.mxu0 %v365
    %528 = vmatpush1.bf16.msra.mxu0 %v364
    %529 = vmatprep.subr.bf16.mxu0 %v369
    %530 = vmatpush1.bf16.msra.mxu0 %v368
    %531 = vmatprep.subr.bf16.mxu0 %v373
    %532 = vmatpush1.bf16.msra.mxu0 %v372
    %533 = vmatprep.subr.bf16.mxu0 %v377
    %534 = vmatpush1.bf16.msra.mxu0 %v376
    %535 = vmatprep.subr.bf16.mxu0 %v381
    %536 = vmatpush1.bf16.msra.mxu0 %v380
    %537 = vmatprep.subr.bf16.mxu0 %v385
    %538 = vmatpush1.bf16.msra.mxu0 %v384
    %539 = vmatprep.subr.bf16.mxu0 %v389
    %540 = vmatpush1.bf16.msra.mxu0 %v388
    %541 = vmatprep.subr.bf16.mxu0 %v393
    %542 = vmatpush1.bf16.msra.mxu0 %v392
    %543 = vmatprep.mubr.bf16.mxu0 %v131
    %544 = vmatmul.mubr.bf16.gmra.mrb[0].mxu0 %v130
    %v545 = vpop.f32.mrb[0].mxu0
    %v546 = vadd.f32 %v109, %v545
    %v547 = vpop.f32.mrb[0].mxu0
    %v548 = vadd.f32 %v113, %v547
    %v549 = vpop.f32.mrb[0].mxu0
    %v550 = vadd.f32 %v109, %v549
    %v551 = vpop.f32.mrb[0].mxu0
    %v552 = vadd.f32 %v113, %v551
    %553 = vmatprep.mubr.bf16.mxu0 %v133
    %554 = vmatmul.mubr.bf16.gmra.mrb[0].mxu0 %v132
    %v555 = vpop.f32.mrb[0].mxu0
    %v556 = vadd.f32 %v109, %v555
    %v557 = vpop.f32.mrb[0].mxu0
    %v558 = vadd.f32 %v113, %v557
    %v559 = vpop.f32.mrb[0].mxu0
    %v560 = vadd.f32 %v109, %v559
    %v561 = vpop.f32.mrb[0].mxu0
    %v562 = vadd.f32 %v113, %v561
    %563 = vdwg.mxu0
    %564 = vst [vmem:[%s3] sm:$0xff] %v493
    %565 = vst [vmem:[%s3 + $0x8] sm:$0xff] %v495
    %566 = vst [vmem:[%s3 + $0x10] sm:$0xff] %v546
    %567 = vst [vmem:[%s3 + $0x18] sm:$0xff] %v548
    %568 = vst [vmem:[%s3 + $0x20] sm:$0xff] %v497
    %569 = vst [vmem:[%s3 + $0x28] sm:$0xff] %v499
    %570 = vst [vmem:[%s3 + $0x30] sm:$0xff] %v550
    %571 = vst [vmem:[%s3 + $0x38] sm:$0xff] %v552
    %572 = vst [vmem:[%s3 + $0x40] sm:$0xff] %v503
    %573 = vst [vmem:[%s3 + $0x48] sm:$0xff] %v505
    %574 = vst [vmem:[%s3 + $0x50] sm:$0xff] %v556
    %575 = vst [vmem:[%s3 + $0x58] sm:$0xff] %v558
    %576 = vst [vmem:[%s3 + $0x60] sm:$0xff] %v507
    %577 = vst [vmem:[%s3 + $0x68] sm:$0xff] %v509
    %578 = vst [vmem:[%s3 + $0x70] sm:$0xff] %v560
    %579 = vst [vmem:[%s3 + $0x78] sm:$0xff] %v562
    // Predicated region
    $region18: #{patch_merging_forward.1} parent=1 // pred_check
      _
    $region19: #{patch_merging_forward.1} parent=1 // pred_check_branch
      %581 = sbr.rel (0) target = $region21
    $region20: #{patch_merging_forward.1} parent=1 // pred_region
      _
    $region21: #{patch_merging_forward.1} parent=1 // pred_fallthru
      _
    // Predicated region
    $region22: #{patch_merging_forward.1} parent=1 // pred_check
      _
    $region23: #{patch_merging_forward.1} parent=1 // pred_check_branch
      %583 = sbr.rel (0) target = $region25
    $region24: #{patch_merging_forward.1} parent=1 // pred_region
      _
    $region25: #{patch_merging_forward.1} parent=1 // pred_fallthru
      _
    %584 = vsyncpa [#allocation3], 1

</llo_original>
